<compile_context>
chip_gen: v7x
topology: tpu7x:2x2x1
jax: 0.10.0
libtpu: 0.0.40
codegen_flags: <defaults>
</compile_context>

<pallas_src>
import jax
import jax.numpy as jnp
from jax import lax
from jax.experimental import pallas as pl
from jax.experimental.pallas import tpu as pltpu

_LANE = 128
_SUBLANE = 8


def _round_up(x, m):
    return ((x + m - 1) // m) * m


def _simple_mlp_kernel(x_ref, w_ref, b_ref, o_ref):
    # w_ref: (8, H)  row 0 = (w0 - w1), row 1 = -(w0 - w1), rows 2..7 = 0
    #        (padded to a full sublane tile so the MXU lhs is well formed).
    # x_ref: (tb, H) batch tile.  Contract the last dim of BOTH operands
    # (attention-score pattern) so the result is lane-dense over the batch.
    d8 = lax.dot_general(
        w_ref[...], x_ref[...],
        dimension_numbers=(((1,), (1,)), ((), ())),
        preferred_element_type=jnp.float32)           # (8, tb) f32
    # Rows 0/1 are the +/- logit differences; add the +/- bias difference.
    d = d8[0:2, :] + b_ref[...]                       # (2, tb) f32
    # 2-class softmax closed form: softmax(l)[:, 0] = sigmoid(l0 - l1),
    # softmax(l)[:, 1] = sigmoid(l1 - l0).  Divide-free, numerically stable
    # sigmoid: 0.5 * (tanh(z/2) + 1).  tanh saturates, so garbage rows in a
    # ragged final x tile stay finite and are simply dropped on writeback.
    o_ref[...] = (0.5 * (jnp.tanh(0.5 * d) + 1.0)).astype(o_ref.dtype)


def _tile_budget_and_cap():
    """Per-tile x byte budget + scoped-VMEM ceiling, derived from the chip."""
    try:
        cap = int(pltpu.get_tpu_info().vmem_capacity_bytes)
    except Exception:
        cap = None
    if cap is None:
        # Conservative fallback, safe everywhere (v7x has 64 MiB/TC physical).
        return 8 * 1024 * 1024, 48 * 1024 * 1024
    # v5e/v6e (128 MiB VMEM): 12 MiB tiles; v7x (64 MiB): ~10.5 MiB tiles.
    # Tiles this size keep the ~0.35 us per-grid-step overhead well under the
    # per-step DMA time at any generation's HBM bandwidth (0.8 - 3.2 TB/s).
    budget = max(4 * 1024 * 1024, min(12 * 1024 * 1024, cap // 6))
    return budget, (cap * 3) // 4


def simple_mlp(x, weight, bias, *, block_b=None):
    """Forward of simpleMLP: softmax(x @ weight.T + bias, axis=1).

    Args:
      x:      [B, H] activations (streamed in its own dtype; pass bf16 to
              halve HBM traffic on v6e/v7x).
      weight: [2, H] PyTorch nn.Linear layout.
      bias:   [2]
      block_b: optional batch tile size hint (rounded to a multiple of 128).
    Returns:
      [B, 2] float32 softmax probabilities.
    """
    B, H = x.shape
    dt = x.dtype
    itemsize = jnp.dtype(dt).itemsize

    # ---- lane-dense operands (tiny, built once in the wrapper) -------------
    wd = (weight[0] - weight[1]).astype(dt)                       # (H,)
    w8 = jnp.zeros((_SUBLANE, H), dt).at[0].set(wd).at[1].set(-wd)  # (8, H)
    bd = (bias[0] - bias[1]).astype(jnp.float32)
    b2 = jnp.stack([bd, -bd]).reshape(2, 1)                       # (2, 1) f32

    # ---- batch tile sized by bytes ------------------------------------------
    budget, vmem_cap = _tile_budget_and_cap()
    row_bytes = max(1, H * itemsize)
    tb = budget // row_bytes if block_b is None else int(block_b)
    # Multiple of 128: satisfies the lane-dense (2, tb) output block and every
    # dtype's sublane packing (8 f32 / 16 bf16 / 32 int8) for the (tb, H) block.
    tb = max(_LANE, (tb // _LANE) * _LANE)
    if tb >= B:
        if B >= 2 * _LANE:
            # >= 2 tiles so both v7x TensorCores stream (no-op on 1-TC chips).
            tb = _round_up((B + 1) // 2, _LANE)
        else:
            tb = B                          # single full-batch block
    grid = (pl.cdiv(B, tb),)

    # ---- explicit scoped-VMEM limit (padded VMEM footprints, 2 buffers) ----
    h_pad = _round_up(H, _LANE)
    need = (
        2 * _round_up(tb, _SUBLANE) * h_pad * itemsize   # x: double-buffered tiles
        + 2 * _SUBLANE * _round_up(tb, _LANE) * 4        # out: (2, tb) lane-dense
        + 2 * _SUBLANE * h_pad * itemsize                # resident weight slab
        + 2 * _SUBLANE * _LANE * 4                       # bias block
    )
    vmem_limit = int(min(max(need + 4 * 1024 * 1024, 16 * 1024 * 1024), vmem_cap))

    cost = pl.CostEstimate(
        flops=4 * B * H,                    # two logit-difference rows
        transcendentals=2 * B,              # one tanh per output element
        bytes_accessed=B * H * itemsize + _SUBLANE * H * itemsize + 2 * B * 4 + 8,
    )

    out_2b = pl.pallas_call(
        _simple_mlp_kernel,
        out_shape=jax.ShapeDtypeStruct((2, B), jnp.float32),
        grid=grid,
        in_specs=[
            pl.BlockSpec((tb, H), lambda i: (i, 0)),         # stream x over batch
            pl.BlockSpec((_SUBLANE, H), lambda i: (0, 0)),   # weights: resident
            pl.BlockSpec((2, 1), lambda i: (0, 0)),          # bias: resident
        ],
        out_specs=pl.BlockSpec((2, tb), lambda i: (0, i)),   # lane-dense output
        compiler_params=pltpu.CompilerParams(
            dimension_semantics=("parallel",),
            vmem_limit_bytes=vmem_limit,
        ),
        cost_estimate=cost,
    )(x, w8, b2)

    # Back to the PyTorch (B, 2) layout.  The transpose is a few percent of
    # total HBM traffic even at H=32; the lane-dense in-kernel stores (and the
    # 16x smaller padded output VMEM footprint) it enables are the bigger win.
    return out_2b.T


def simple_mlp_ref(x, weight, bias):
    logits = x @ weight.T + bias
    return jax.nn.softmax(logits, axis=1)


if __name__ == "__main__":
    key = jax.random.PRNGKey(0)
    k_x, k_w, k_b, k_x2, k_x3 = jax.random.split(key, 5)

    B, H = 8, 32                              # small shapes: batch=8, hidden=32
    x = jax.random.normal(k_x, (B, H), dtype=jnp.float32)

    # Deterministic init mirroring nn.Linear(h_size, 2): U(-1/sqrt(H), 1/sqrt(H)).
    bound = 1.0 / (H ** 0.5)
    weight = jax.random.uniform(k_w, (2, H), jnp.float32, -bound, bound)
    bias = jax.random.uniform(k_b, (2,), jnp.float32, -bound, bound)

    out = jax.block_until_ready(simple_mlp(x, weight, bias))
    ref = simple_mlp_ref(x, weight, bias)
    assert out.shape == (B, 2)
    assert jnp.allclose(out, ref, atol=1e-5, rtol=1e-5), "mismatch vs reference"
    assert jnp.allclose(jnp.sum(out, axis=1), 1.0, atol=1e-5), "rows must sum to 1"

    # Multi-tile path: weights stay resident, x streams over 3 batch tiles.
    B2 = 384
    x2 = jax.random.normal(k_x2, (B2, H), dtype=jnp.float32)
    out2 = jax.block_until_ready(simple_mlp(x2, weight, bias, block_b=128))
    ref2 = simple_mlp_ref(x2, weight, bias)
    assert jnp.allclose(out2, ref2, atol=1e-5, rtol=1e-5), "tiled path mismatch"

    # Ragged final tile (200 = 128 + 72): exercises masked writeback.
    B3 = 200
    x3 = jax.random.normal(k_x3, (B3, H), dtype=jnp.float32)
    out3 = jax.block_until_ready(simple_mlp(x3, weight, bias, block_b=128))
    ref3 = simple_mlp_ref(x3, weight, bias)
    assert jnp.allclose(out3, ref3, atol=1e-5, rtol=1e-5), "ragged path mismatch"

    print("KERNEL_OK")
</pallas_src>

<mosaic_0001>
module attributes {stable_mosaic.version = 11 : i64} {
  func.func @_simple_mlp_kernel(%arg0: i32, %arg1: memref<8x32xf32, #tpu.memory_space<vmem>>, %arg2: memref<8x32xf32, #tpu.memory_space<vmem>>, %arg3: memref<2x1xf32, #tpu.memory_space<vmem>>, %arg4: memref<2x8xf32, #tpu.memory_space<vmem>>) attributes {dimension_semantics = [#tpu.dimension_semantics<parallel>], iteration_bounds = array<i64: 1>, scalar_prefetch = 0 : i64, scratch_operands = 0 : i64, tpu.core_type = #tpu.core_type<tc>, window_params = [{transform_indices = @transform_0, window_bounds = array<i64: 8, 32>}, {pipeline_mode = #tpu.pipeline_mode<synchronous>, transform_indices = @transform_1, window_bounds = array<i64: 8, 32>}, {pipeline_mode = #tpu.pipeline_mode<synchronous>, transform_indices = @transform_2, window_bounds = array<i64: 2, 1>}, {transform_indices = @transform_3, window_bounds = array<i64: 2, 8>}]} {
    %c0 = arith.constant 0 : index
    %c0_0 = arith.constant 0 : index
    %0 = vector.load %arg2[%c0, %c0_0] : memref<8x32xf32, #tpu.memory_space<vmem>>, vector<8x32xf32>
    %c0_1 = arith.constant 0 : index
    %c0_2 = arith.constant 0 : index
    %1 = vector.load %arg1[%c0_1, %c0_2] : memref<8x32xf32, #tpu.memory_space<vmem>>, vector<8x32xf32>
    %cst = arith.constant dense<0.000000e+00> : vector<8x8xf32>
    %2 = tpu.matmul %0, %1, %cst {dimension_numbers = #tpu.dot_dimension_numbers<[1], [1], [0], [0], [0, 0, 1, 0], [], []>} : vector<8x32xf32>, vector<8x32xf32>, vector<8x8xf32> -> vector<8x8xf32>
    %3 = vector.extract_strided_slice %2 {offsets = [0, 0], sizes = [2, 8], strides = [1, 1]} : vector<8x8xf32> to vector<2x8xf32>
    %c0_3 = arith.constant 0 : index
    %c0_4 = arith.constant 0 : index
    %4 = vector.load %arg3[%c0_3, %c0_4] : memref<2x1xf32, #tpu.memory_space<vmem>>, vector<2x1xf32>
    %5 = vector.broadcast %4 : vector<2x1xf32> to vector<2x8xf32>
    %6 = arith.addf %3, %5 : vector<2x8xf32>
    %cst_5 = arith.constant 5.000000e-01 : f32
    %7 = vector.broadcast %cst_5 : f32 to vector<2x8xf32>
    %8 = arith.mulf %7, %6 : vector<2x8xf32>
    %9 = math.tanh %8 : vector<2x8xf32>
    %cst_6 = arith.constant 1.000000e+00 : f32
    %10 = vector.broadcast %cst_6 : f32 to vector<2x8xf32>
    %11 = arith.addf %9, %10 : vector<2x8xf32>
    %cst_7 = arith.constant 5.000000e-01 : f32
    %12 = vector.broadcast %cst_7 : f32 to vector<2x8xf32>
    %13 = arith.mulf %12, %11 : vector<2x8xf32>
    %c0_8 = arith.constant 0 : index
    %c0_9 = arith.constant 0 : index
    %14 = vector.load %arg4[%c0_8, %c0_9] : memref<2x8xf32, #tpu.memory_space<vmem>>, vector<2x8xf32>
    tpu.vector_store %arg4[%c0_8, %c0_9], %13 {strides = array<i32>} : memref<2x8xf32, #tpu.memory_space<vmem>>, vector<2x8xf32>,
    return
  }
  func.func @transform_0(%arg0: i32) -> (i32, i32) {
    %c0_i32 = arith.constant 0 : i32
    %c0_i32_0 = arith.constant 0 : i32
    return %arg0, %c0_i32 : i32, i32
  }
  func.func @transform_1(%arg0: i32) -> (i32, i32) {
    %c0_i32 = arith.constant 0 : i32
    %c0_i32_0 = arith.constant 0 : i32
    %c0_i32_1 = arith.constant 0 : i32
    return %c0_i32, %c0_i32_0 : i32, i32
  }
  func.func @transform_2(%arg0: i32) -> (i32, i32) {
    %c0_i32 = arith.constant 0 : i32
    %c0_i32_0 = arith.constant 0 : i32
    %c0_i32_1 = arith.constant 0 : i32
    return %c0_i32, %c0_i32_0 : i32, i32
  }
  func.func @transform_3(%arg0: i32) -> (i32, i32) {
    %c0_i32 = arith.constant 0 : i32
    %c0_i32_0 = arith.constant 0 : i32
    return %c0_i32, %arg0 : i32, i32
  }
}

</mosaic_0001>

<llo_original>
// kernel: tpu_custom_call.1
$region0: #{tpu_custom_call.1}
  #allocation0 [shape = 'u32[]', space=smem, size = 0x4, offset = 0x4, fixed_abs, tag = 'smem constant byte address 0x4 - core index']
  #allocation1 [shape = 'u32[144,128]{1,0:T(1,128)}', space=vmem, size = 0x12000, scoped, tag = 'internal scratch']
  %s0 = inlined_call_operand.hbm [shape: f32[8,32], index: 0, kind: input, shape index: {}]
  %s1 = inlined_call_operand.hbm [shape: f32[8,32], index: 1, kind: input, shape index: {}]
  %s2 = inlined_call_operand.vmem [shape: f32[2,1], index: 2, kind: input, shape index: {}]
  %s3 = inlined_call_operand.hbm [shape: f32[2,8], index: 3, kind: output, shape index: {}]
  %s4 = sld [smem:[#allocation0]]
  $region30: #{tpu_custom_call.1} parent=0
    _
  %s6 = ssub.s32 1, %s4
  %s7 = scalar_select 0, %s6, %s4
  $region1: #{tpu_custom_call.1} parent=0
    #allocation2 [shape = 'u8[4096]{0}', space=vmem, size = 0x1000, scoped, tag = 'input window, operand 0, single buffered']
    #allocation3 [shape = 's32[1]{0}', space=sflag, size = 0x4, scoped, tag = 'scoped memory for tpu_custom_call.1']
    #allocation4 [shape = 's32[1]{0}', space=sflag, size = 0x4, scoped, tag = 'scoped memory for tpu_custom_call.1']
    #allocation5 [shape = 'u8[4096]{0}', space=vmem, size = 0x1000, scoped, tag = 'input window, operand 1, single buffered']
    #allocation6 [shape = 's32[1]{0}', space=sflag, size = 0x4, scoped, tag = 'scoped memory for tpu_custom_call.1']
    #allocation7 [shape = 'u8[1024]{0}', space=vmem, size = 0x400, scoped, tag = 'output window, operand 0, single buffered']
    %8 = vsyncpa [#allocation3], 0
    %9 = vsyncpa [#allocation6], 0
    %10 = vsyncpa [#allocation4], 0
    // Predicated region
    $region2: #{tpu_custom_call.1} parent=1 // pred_check
      _
    $region3: #{tpu_custom_call.1} parent=1 // pred_check_branch
      %12 = sbr.rel (0) target = $region5
    $region4: #{tpu_custom_call.1} parent=1 // pred_region
      %s14 = ssub.s32 128, 128
      %15 = vsyncadd [#allocation3], %s14
      %s17 = sshll.u32 [#allocation2], 4
      %s18 = int_to_ptr.vmem [resolvable:$true] %s17
      %20 = dma.hbm_to_vmem [thread:$0]  %s0, 128, %s18, [#allocation3]
    $region5: #{tpu_custom_call.1} parent=1 // pred_fallthru
      _
    // Predicated region
    $region6: #{tpu_custom_call.1} parent=1 // pred_check
      _
    $region7: #{tpu_custom_call.1} parent=1 // pred_check_branch
      %22 = sbr.rel (0) target = $region9
    $region8: #{tpu_custom_call.1} parent=1 // pred_region
      %s24 = ssub.s32 128, 128
      %25 = vsyncadd [#allocation6], %s24
      %s27 = sshll.u32 [#allocation5], 4
      %s28 = int_to_ptr.vmem [resolvable:$true] %s27
      %30 = dma.hbm_to_vmem [thread:$0]  %s1, 128, %s28, [#allocation6]
    $region9: #{tpu_custom_call.1} parent=1 // pred_fallthru
      _
    // Predicated region
    $region10: #{tpu_custom_call.1} parent=1 // pred_check
      _
    $region11: #{tpu_custom_call.1} parent=1 // pred_check_branch
      %32 = sbr.rel (0) target = $region13
    $region12: #{tpu_custom_call.1} parent=1 // pred_region
      _
    $region13: #{tpu_custom_call.1} parent=1 // pred_fallthru
      _
    // Predicated region
    $region14: #{tpu_custom_call.1} parent=1 // pred_check
      _
    $region15: #{tpu_custom_call.1} parent=1 // pred_check_branch
      %34 = sbr.rel (0) target = $region17
    $region16: #{tpu_custom_call.1} parent=1 // pred_region
      %35 = dma.done [#allocation3], 128
    $region17: #{tpu_custom_call.1} parent=1 // pred_fallthru
      _
    // Predicated region
    $region18: #{tpu_custom_call.1} parent=1 // pred_check
      _
    $region19: #{tpu_custom_call.1} parent=1 // pred_check_branch
      %37 = sbr.rel (0) target = $region21
    $region20: #{tpu_custom_call.1} parent=1 // pred_region
      %38 = dma.done [#allocation6], 128
    $region21: #{tpu_custom_call.1} parent=1 // pred_fallthru
      _
    %v39 = vld [vmem:[#allocation5] sm:$0xff]
    %v40 = vld [vmem:[#allocation2] sm:$0xff]
    %vm41 = vcmask 261120
    %v43 = vsel %vm41, %v39, 0
    %v46 = vsel %vm41, %v40, 0
    %48 = vmatprep.subr.mxu0 0.0
    %49 = vmatpush1.xpose.msra.mxu0 %v46
    %50 = vmatprep.subr.mxu0 0.0
    %51 = vmatpush1.xpose.msra.mxu0 0.0
    %52 = vmatprep.subr.mxu0 0.0
    %53 = vmatpush1.xpose.msra.mxu0 0.0
    %54 = vmatprep.subr.mxu0 0.0
    %55 = vmatpush1.xpose.msra.mxu0 0.0
    %56 = vmatprep.subr.mxu0 0.0
    %57 = vmatpush1.xpose.msra.mxu0 0.0
    %58 = vmatprep.subr.mxu0 0.0
    %59 = vmatpush1.xpose.msra.mxu0 0.0
    %60 = vmatprep.subr.mxu0 0.0
    %61 = vmatpush1.xpose.msra.mxu0 0.0
    %62 = vmatprep.subr.mxu0 0.0
    %63 = vmatpush1.xpose.msra.mxu0 0.0
    %64 = vmatprep.subr.mxu0 0.0
    %65 = vmatpush1.xpose.msra.mxu0 0.0
    %66 = vmatprep.subr.mxu0 0.0
    %67 = vmatpush1.xpose.msra.mxu0 0.0
    %68 = vmatprep.subr.mxu0 0.0
    %69 = vmatpush1.xpose.msra.mxu0 0.0
    %70 = vmatprep.subr.mxu0 0.0
    %71 = vmatpush1.xpose.msra.mxu0 0.0
    %72 = vmatprep.subr.mxu0 0.0
    %73 = vmatpush1.xpose.msra.mxu0 0.0
    %74 = vmatprep.subr.mxu0 0.0
    %75 = vmatpush1.xpose.msra.mxu0 0.0
    %76 = vmatprep.subr.mxu0 0.0
    %77 = vmatpush1.xpose.msra.mxu0 0.0
    %78 = vmatprep.subr.mxu0 0.0
    %79 = vmatpush1.xpose.msra.mxu0 0.0
    %80 = vmatprep.subr.mxu0 0.0
    %81 = vmatpush1.xpose.msra.mxu0 0.0
    %82 = vmatprep.subr.mxu0 0.0
    %83 = vmatpush1.xpose.msra.mxu0 0.0
    %84 = vmatprep.subr.mxu0 0.0
    %85 = vmatpush1.xpose.msra.mxu0 0.0
    %86 = vmatprep.subr.mxu0 0.0
    %87 = vmatpush1.xpose.msra.mxu0 0.0
    %88 = vmatprep.subr.mxu0 0.0
    %89 = vmatpush1.xpose.msra.mxu0 0.0
    %90 = vmatprep.subr.mxu0 0.0
    %91 = vmatpush1.xpose.msra.mxu0 0.0
    %92 = vmatprep.subr.mxu0 0.0
    %93 = vmatpush1.xpose.msra.mxu0 0.0
    %94 = vmatprep.subr.mxu0 0.0
    %95 = vmatpush1.xpose.msra.mxu0 0.0
    %96 = vmatprep.subr.mxu0 0.0
    %97 = vmatpush1.xpose.msra.mxu0 0.0
    %98 = vmatprep.subr.mxu0 0.0
    %99 = vmatpush1.xpose.msra.mxu0 0.0
    %100 = vmatprep.subr.mxu0 0.0
    %101 = vmatpush1.xpose.msra.mxu0 0.0
    %102 = vmatprep.subr.mxu0 0.0
    %103 = vmatpush1.xpose.msra.mxu0 0.0
    %104 = vmatprep.subr.mxu0 0.0
    %105 = vmatpush1.xpose.msra.mxu0 0.0
    %106 = vmatprep.subr.mxu0 0.0
    %107 = vmatpush1.xpose.msra.mxu0 0.0
    %108 = vmatprep.subr.mxu0 0.0
    %109 = vmatpush1.xpose.msra.mxu0 0.0
    %110 = vmatprep.subr.mxu0 0.0
    %111 = vmatpush1.xpose.msra.mxu0 0.0
    %112 = vmatprep.mubr.f32.mxu0 0.0
    %113 = vmatmul.mubr.f32.gmra.mrb[0].mxu0 %v43
    %v114 = vpop.f32.mrb[0].mxu0
    %v115 = vadd.f32 0.0, %v114
    %v116 = vpop.f32.mrb[0].mxu0
    %117 = vdwg.mxu0
    %v118 = vld [vmem:[%s2] sm:$0x3]
    %120 = vset.pattern.permute.xlu0 0
    %121 = vperm.xlu0 %120, %v118
    %v122 = vpop.permute.xlu0 %121
    %v124 = vadd.f32 %v115, %v122
    %v125 = vmul.f32 %v124, 0.5
    %v126 = vtanh.pop %v125
    %v127 = vadd.f32 %v126, 1.0
    %v128 = vmul.f32 %v127, 0.5
    %vm129 = vcmask 58368
    %130 = vst.msk [vmem:[#allocation7] sm:$0x3] %vm129, %v128
    // Predicated region
    $region22: #{tpu_custom_call.1} parent=1 // pred_check
      _
    $region23: #{tpu_custom_call.1} parent=1 // pred_check_branch
      %132 = sbr.rel (0) target = $region25
    $region24: #{tpu_custom_call.1} parent=1 // pred_region
      %s134 = ssub.s32 32, 32
      %135 = vsyncadd [#allocation4], %s134
      %s137 = sshll.u32 [#allocation7], 4
      %s138 = int_to_ptr.vmem [resolvable:$true] %s137
      %140 = dma.vmem_to_hbm [thread:$0]  %s138, 32, %s3, [#allocation4]
    $region25: #{tpu_custom_call.1} parent=1 // pred_fallthru
      _
    // Predicated region
    $region26: #{tpu_custom_call.1} parent=1 // pred_check
      _
    $region27: #{tpu_custom_call.1} parent=1 // pred_check_branch
      %142 = sbr.rel (0) target = $region29
    $region28: #{tpu_custom_call.1} parent=1 // pred_region
      %143 = dma.done [#allocation4], 32
    $region29: #{tpu_custom_call.1} parent=1 // pred_fallthru
      _
    %144 = vsyncpa [#allocation3], 1
    %145 = vsyncpa [#allocation6], 1
    %146 = vsyncpa [#allocation4], 1

</llo_original>
